<compile_context>
chip_gen: v5e
topology: v5e:2x2
jax: 0.10.0
libtpu: 0.0.40
codegen_flags: <defaults>
</compile_context>

<pallas_src>
import functools
import math

import jax
import jax.numpy as jnp
from jax import lax
from jax.experimental import pallas as pl
from jax.experimental.pallas import tpu as pltpu

_LANES = 128
_SUBLANES = 8
_TILE_BYTES = 2 * 1024 * 1024   # per-block output budget (x2 for double buffering)
_SPLIT_BYTES = 2 * 1024 * 1024  # below this total size: single grid step


def _pe_kernel(div_ref, lpos_ref, smask_ref, cmask_ref, o_ref, *, pack: int):
    """Compute one (tile_r, width) tile of the packed PE table; width == pack*d_model.

    Packed layout: row r holds positions r*pack .. r*pack+pack-1 side by side
    (pack == 1 is the plain (seq, d_model) layout). Lane l -> position offset
    l // d_model, feature column l % d_model. All per-lane constants arrive as
    (1, width) inputs; per-step work is add + mul + sin/cos + 0/1-mask blend.
    """
    i = pl.program_id(0)
    tile_r = o_ref.shape[0]

    # Per-row base position, (tile_r, 1); positions are exact integers in fp32.
    row = lax.broadcasted_iota(jnp.int32, (tile_r, 1), 0) + i * tile_r
    pos = (row * pack).astype(jnp.float32) + lpos_ref[...]          # (tile_r, width)

    # Same rounding as the reference: angle = position * div_term (single multiply).
    angle = pos * div_ref[...]

    # Exact select: masks are exactly 0.0 / 1.0, so even columns are exactly sin(angle)
    # and odd columns exactly cos(angle). sin+cos on full width is still cheap relative
    # to the HBM writeback this kernel is bound by.
    val = smask_ref[...] * jnp.sin(angle) + cmask_ref[...] * jnp.cos(angle)
    o_ref[...] = val.astype(o_ref.dtype)


def _choose_pack(d_model: int) -> int:
    """Smallest pack making pack*d_model a multiple of 128 (lane-dense stores)."""
    if d_model % _LANES == 0:
        return 1
    pack = math.lcm(d_model, _LANES) // d_model
    # Don't let a single packed row (x 8 sublanes minimum block) blow the block budget.
    if pack * d_model * 4 * _SUBLANES > _TILE_BYTES:
        return 1  # TODO(synk): pathological d_model keeps masked (vst.msk) stores
    return pack


def _choose_tile_r(n_rows: int, width: int, itemsize: int, sub: int) -> int:
    """Row-tile size: single block for small tables, ~2 MiB blocks otherwise."""
    row_bytes = width * itemsize
    total = n_rows * row_bytes
    if total <= _SPLIT_BYTES:
        # Single grid step: a multi-step grid is a serial loop on v5e/v6e (one TC),
        # and splitting a tiny table across v7x's two TCs doesn't pay either.
        return n_rows
    cap = max(sub, _TILE_BYTES // row_bytes)
    cap = max((cap // sub) * sub, sub)
    return min(cap, n_rows)


def _lane_constants(d_model: int, pack: int):
    """(1, width) per-lane constants: div_term, in-row position offset, parity masks."""
    width = pack * d_model
    lane = jnp.arange(width, dtype=jnp.int32)
    col = lane % d_model
    lane_pos = (lane // d_model).astype(jnp.float32)
    scale = jnp.float32(-math.log(10000.0) / d_model)
    # div_term for column c is exp(-(2*(c//2)) * ln(10000)/d_model); c - c%2 == 2*(c//2)
    div_term = jnp.exp((col - (col % 2)).astype(jnp.float32) * scale)
    sin_mask = ((col % 2) == 0).astype(jnp.float32)
    cos_mask = ((col % 2) == 1).astype(jnp.float32)
    return (div_term.reshape(1, width), lane_pos.reshape(1, width),
            sin_mask.reshape(1, width), cos_mask.reshape(1, width))


def _build_pe(seq_len: int, d_model: int, dtype) -> jax.Array:
    pack = _choose_pack(d_model)
    width = pack * d_model
    n_rows = -(-seq_len // pack)                      # ceil; ragged tail sliced below
    itemsize = jnp.dtype(dtype).itemsize
    sub = _SUBLANES if itemsize >= 4 else 2 * _SUBLANES
    tile_r = _choose_tile_r(n_rows, width, itemsize, sub)
    grid = (pl.cdiv(n_rows, tile_r),)

    div_term, lane_pos, sin_mask, cos_mask = _lane_constants(d_model, pack)
    const_spec = pl.BlockSpec((1, width), lambda i: (0, 0))

    kernel = functools.partial(_pe_kernel, pack=pack)
    pe = pl.pallas_call(
        kernel,
        out_shape=jax.ShapeDtypeStruct((n_rows, width), dtype),
        grid_spec=pltpu.PrefetchScalarGridSpec(
            num_scalar_prefetch=0,
            grid=grid,
            in_specs=[const_spec, const_spec, const_spec, const_spec],
            out_specs=pl.BlockSpec((tile_r, width), lambda i: (i, 0)),
        ),
        compiler_params=pltpu.CompilerParams(
            dimension_semantics=("parallel",)),
    )(div_term, lane_pos, sin_mask, cos_mask)

    # Row-major (n_rows, pack*d_model) is bit-identical memory to (n_rows*pack, d_model).
    pe = pe.reshape(n_rows * pack, d_model)
    if n_rows * pack != seq_len:
        pe = pe[:seq_len]
    return pe[None]


_PE_CACHE: dict = {}


def positional_embedding(x: jax.Array, d_model: int, max_len: int = 5000,
                         dtype=jnp.float32) -> jax.Array:
    """Equivalent of PositionalEmbedding(d_model, max_len)(x) -> (1, seq_len, d_model)."""
    seq_len = x.shape[1]
    assert seq_len <= max_len, "sequence longer than max_len"
    assert d_model % 2 == 0, "d_model must be even (as in the PyTorch module)"
    # The output depends only on shapes, never on x's values -> cache across calls.
    key = (seq_len, d_model, max_len, jnp.dtype(dtype).name)
    cached = _PE_CACHE.get(key)
    if cached is not None:
        return cached
    pe = _build_pe(seq_len, d_model, dtype)
    _PE_CACHE[key] = pe
    return pe


def _reference_pe(d_model: int, seq_len: int) -> jnp.ndarray:
    """Pure-JAX reference mirroring the PyTorch buffer construction."""
    position = jnp.arange(seq_len, dtype=jnp.float32)[:, None]
    div_term = jnp.exp(
        jnp.arange(0, d_model, 2, dtype=jnp.float32) * (-math.log(10000.0) / d_model))
    pe = jnp.zeros((seq_len, d_model), jnp.float32)
    pe = pe.at[:, 0::2].set(jnp.sin(position * div_term))
    pe = pe.at[:, 1::2].set(jnp.cos(position * div_term))
    return pe[None]


if __name__ == "__main__":
    key = jax.random.PRNGKey(0)

    # Primary config matching the module's forward: x is (batch, seq, d_model).
    batch, seq, d_model = 2, 8, 32
    x = jax.random.normal(key, (batch, seq, d_model), dtype=jnp.float32)
    out = jax.block_until_ready(positional_embedding(x, d_model))
    assert out.shape == (1, seq, d_model), out.shape
    assert out.dtype == jnp.float32
    assert jnp.allclose(out, _reference_pe(d_model, seq), atol=1e-5, rtol=1e-5), \
        "mismatch vs reference (packed path)"
    # Cache hit path.
    out_again = positional_embedding(x, d_model)
    assert out_again is out

    # d_model % 128 == 0 path, lcm-packed d_model=96 path, and ragged seq % pack != 0.
    for seq2, dm2 in ((16, 128), (24, 96), (25, 96), (256, 64)):
        x2 = jax.random.normal(key, (1, seq2, dm2), dtype=jnp.float32)
        out2 = jax.block_until_ready(positional_embedding(x2, dm2))
        assert out2.shape == (1, seq2, dm2)
        assert jnp.allclose(out2, _reference_pe(dm2, seq2), atol=1e-5, rtol=1e-5), \
            f"mismatch vs reference for d_model={dm2}, seq={seq2}"

    # Larger table: exercises the multi-step "parallel" grid and the ragged last block,
    # and checks the direct-cos accuracy at larger positions (looser tol for any
    # sin/cos implementation delta between the in-kernel and XLA lowerings).
    seq3, dm3 = 4096, 160
    x3 = jax.random.normal(key, (1, seq3, dm3), dtype=jnp.float32)
    out3 = jax.block_until_ready(positional_embedding(x3, dm3))
    assert out3.shape == (1, seq3, dm3)
    assert jnp.allclose(out3, _reference_pe(dm3, seq3), atol=5e-4, rtol=0), \
        "mismatch vs reference at large positions"

    print("KERNEL_OK")
</pallas_src>

<mosaic_0001>
module attributes {stable_mosaic.version = 11 : i64} {
  func.func @_pe_kernel(%arg0: i32, %arg1: memref<1x128xf32, #tpu.memory_space<vmem>>, %arg2: memref<1x128xf32, #tpu.memory_space<vmem>>, %arg3: memref<1x128xf32, #tpu.memory_space<vmem>>, %arg4: memref<1x128xf32, #tpu.memory_space<vmem>>, %arg5: memref<2x128xf32, #tpu.memory_space<vmem>>) attributes {dimension_semantics = [#tpu.dimension_semantics<parallel>], iteration_bounds = array<i64: 1>, scalar_prefetch = 0 : i64, scratch_operands = 0 : i64, tpu.core_type = #tpu.core_type<tc>, window_params = [{pipeline_mode = #tpu.pipeline_mode<synchronous>, transform_indices = @transform_0, window_bounds = array<i64: 1, 128>}, {pipeline_mode = #tpu.pipeline_mode<synchronous>, transform_indices = @transform_1, window_bounds = array<i64: 1, 128>}, {pipeline_mode = #tpu.pipeline_mode<synchronous>, transform_indices = @transform_2, window_bounds = array<i64: 1, 128>}, {pipeline_mode = #tpu.pipeline_mode<synchronous>, transform_indices = @transform_3, window_bounds = array<i64: 1, 128>}, {transform_indices = @transform_4, window_bounds = array<i64: 2, 128>}]} {
    %0 = tpu.iota {dimensions = array<i32: 0>} : vector<2x1xi32>
    %c2_i32 = arith.constant 2 : i32
    %1 = arith.muli %arg0, %c2_i32 : i32
    %2 = vector.broadcast %1 : i32 to vector<2x1xi32>
    %3 = arith.addi %0, %2 : vector<2x1xi32>
    %c4_i32 = arith.constant 4 : i32
    %4 = vector.broadcast %c4_i32 : i32 to vector<2x1xi32>
    %5 = arith.muli %3, %4 : vector<2x1xi32>
    %6 = arith.sitofp %5 : vector<2x1xi32> to vector<2x1xf32>
    %c0 = arith.constant 0 : index
    %c0_0 = arith.constant 0 : index
    %7 = vector.load %arg2[%c0, %c0_0] : memref<1x128xf32, #tpu.memory_space<vmem>>, vector<1x128xf32>
    %8 = vector.broadcast %6 : vector<2x1xf32> to vector<2x128xf32>
    %9 = vector.broadcast %7 : vector<1x128xf32> to vector<2x128xf32>
    %10 = arith.addf %8, %9 : vector<2x128xf32>
    %c0_1 = arith.constant 0 : index
    %c0_2 = arith.constant 0 : index
    %11 = vector.load %arg1[%c0_1, %c0_2] : memref<1x128xf32, #tpu.memory_space<vmem>>, vector<1x128xf32>
    %12 = vector.broadcast %11 : vector<1x128xf32> to vector<2x128xf32>
    %13 = arith.mulf %10, %12 : vector<2x128xf32>
    %c0_3 = arith.constant 0 : index
    %c0_4 = arith.constant 0 : index
    %14 = vector.load %arg3[%c0_3, %c0_4] : memref<1x128xf32, #tpu.memory_space<vmem>>, vector<1x128xf32>
    %15 = math.sin %13 : vector<2x128xf32>
    %16 = vector.broadcast %14 : vector<1x128xf32> to vector<2x128xf32>
    %17 = arith.mulf %16, %15 : vector<2x128xf32>
    %c0_5 = arith.constant 0 : index
    %c0_6 = arith.constant 0 : index
    %18 = vector.load %arg4[%c0_5, %c0_6] : memref<1x128xf32, #tpu.memory_space<vmem>>, vector<1x128xf32>
    %19 = math.cos %13 : vector<2x128xf32>
    %20 = vector.broadcast %18 : vector<1x128xf32> to vector<2x128xf32>
    %21 = arith.mulf %20, %19 : vector<2x128xf32>
    %22 = arith.addf %17, %21 : vector<2x128xf32>
    %c0_7 = arith.constant 0 : index
    %c0_8 = arith.constant 0 : index
    %23 = vector.load %arg5[%c0_7, %c0_8] : memref<2x128xf32, #tpu.memory_space<vmem>>, vector<2x128xf32>
    tpu.vector_store %arg5[%c0_7, %c0_8], %22 {strides = array<i32>} : memref<2x128xf32, #tpu.memory_space<vmem>>, vector<2x128xf32>,
    return
  }
  func.func @transform_0(%arg0: i32) -> (i32, i32) {
    %c0_i32 = arith.constant 0 : i32
    %c0_i32_0 = arith.constant 0 : i32
    %c0_i32_1 = arith.constant 0 : i32
    return %c0_i32, %c0_i32_0 : i32, i32
  }
  func.func @transform_1(%arg0: i32) -> (i32, i32) {
    %c0_i32 = arith.constant 0 : i32
    %c0_i32_0 = arith.constant 0 : i32
    %c0_i32_1 = arith.constant 0 : i32
    return %c0_i32, %c0_i32_0 : i32, i32
  }
  func.func @transform_2(%arg0: i32) -> (i32, i32) {
    %c0_i32 = arith.constant 0 : i32
    %c0_i32_0 = arith.constant 0 : i32
    %c0_i32_1 = arith.constant 0 : i32
    return %c0_i32, %c0_i32_0 : i32, i32
  }
  func.func @transform_3(%arg0: i32) -> (i32, i32) {
    %c0_i32 = arith.constant 0 : i32
    %c0_i32_0 = arith.constant 0 : i32
    %c0_i32_1 = arith.constant 0 : i32
    return %c0_i32, %c0_i32_0 : i32, i32
  }
  func.func @transform_4(%arg0: i32) -> (i32, i32) {
    %c0_i32 = arith.constant 0 : i32
    %c0_i32_0 = arith.constant 0 : i32
    return %arg0, %c0_i32 : i32, i32
  }
}

</mosaic_0001>

<llo_original>
// kernel: tpu_custom_call.1
$region0: #{tpu_custom_call.1}
  #allocation0 [shape = 'u32[]', space=smem, size = 0x4, offset = 0x4, fixed_abs, tag = 'smem constant byte address 0x4 - core index']
  #allocation1 [shape = 'u32[72,128]{1,0:T(1,128)}', space=vmem, size = 0x9000, scoped, tag = 'internal scratch']
  %s0 = inlined_call_operand.hbm [shape: f32[1,128], index: 0, kind: input, shape index: {}]
  %s1 = inlined_call_operand.hbm [shape: f32[1,128], index: 1, kind: input, shape index: {}]
  %s2 = inlined_call_operand.vmem [shape: f32[1,128], index: 2, kind: input, shape index: {}]
  %s3 = inlined_call_operand.vmem [shape: f32[1,128], index: 3, kind: input, shape index: {}]
  %s4 = inlined_call_operand.hbm [shape: f32[2,128], index: 4, kind: output, shape index: {}]
  %s5 = sld [smem:[#allocation0]]
  $region34: #{tpu_custom_call.1} parent=0
    _
  %s7 = ssub.s32 1, %s5
  %s8 = scalar_select 0, %s7, %s5
  $region1: #{tpu_custom_call.1} parent=0
    #allocation2 [shape = 'u8[512]{0}', space=vmem, size = 0x400, scoped, tag = 'input window, operand 0, single buffered']
    #allocation3 [shape = 's32[1]{0}', space=sflag, size = 0x4, scoped, tag = 'scoped memory for tpu_custom_call.1']
    #allocation4 [shape = 's32[1]{0}', space=sflag, size = 0x4, scoped, tag = 'scoped memory for tpu_custom_call.1']
    #allocation5 [shape = 'u8[512]{0}', space=vmem, size = 0x400, scoped, tag = 'input window, operand 1, single buffered']
    #allocation6 [shape = 's32[1]{0}', space=sflag, size = 0x4, scoped, tag = 'scoped memory for tpu_custom_call.1']
    #allocation7 [shape = 'u8[1024]{0}', space=vmem, size = 0x400, scoped, tag = 'output window, operand 0, single buffered']
    %9 = vsyncpa [#allocation3], 0
    %10 = vsyncpa [#allocation6], 0
    %11 = vsyncpa [#allocation4], 0
    // Predicated region
    $region2: #{tpu_custom_call.1} parent=1 // pred_check
      _
    $region3: #{tpu_custom_call.1} parent=1 // pred_check_branch
      %13 = sbr.rel (0) target = $region5
    $region4: #{tpu_custom_call.1} parent=1 // pred_region
      %15 = vsyncadd [#allocation3], 0
      %s17 = sshll.u32 %s0, 4
      %s18 = int_to_ptr.hbm [resolvable:$true] %s17
      %s19 = sshll.u32 [#allocation2], 4
      %s20 = int_to_ptr.vmem [resolvable:$true] %s19
      %22 = dma.hbm_to_vmem [thread:$0]  %s18, 16, %s20, [#allocation3]
    $region5: #{tpu_custom_call.1} parent=1 // pred_fallthru
      _
    // Predicated region
    $region6: #{tpu_custom_call.1} parent=1 // pred_check
      _
    $region7: #{tpu_custom_call.1} parent=1 // pred_check_branch
      %24 = sbr.rel (0) target = $region9
    $region8: #{tpu_custom_call.1} parent=1 // pred_region
      %26 = vsyncadd [#allocation6], 0
      %s28 = sshll.u32 %s1, 4
      %s29 = int_to_ptr.hbm [resolvable:$true] %s28
      %s30 = sshll.u32 [#allocation5], 4
      %s31 = int_to_ptr.vmem [resolvable:$true] %s30
      %33 = dma.hbm_to_vmem [thread:$0]  %s29, 16, %s31, [#allocation6]
    $region9: #{tpu_custom_call.1} parent=1 // pred_fallthru
      _
    // Predicated region
    $region10: #{tpu_custom_call.1} parent=1 // pred_check
      _
    $region11: #{tpu_custom_call.1} parent=1 // pred_check_branch
      %35 = sbr.rel (0) target = $region13
    $region12: #{tpu_custom_call.1} parent=1 // pred_region
      _
    $region13: #{tpu_custom_call.1} parent=1 // pred_fallthru
      _
    // Predicated region
    $region14: #{tpu_custom_call.1} parent=1 // pred_check
      _
    $region15: #{tpu_custom_call.1} parent=1 // pred_check_branch
      %37 = sbr.rel (0) target = $region17
    $region16: #{tpu_custom_call.1} parent=1 // pred_region
      _
    $region17: #{tpu_custom_call.1} parent=1 // pred_fallthru
      _
    // Predicated region
    $region18: #{tpu_custom_call.1} parent=1 // pred_check
      _
    $region19: #{tpu_custom_call.1} parent=1 // pred_check_branch
      %39 = sbr.rel (0) target = $region21
    $region20: #{tpu_custom_call.1} parent=1 // pred_region
      %41 = dma.done [#allocation3], 16
    $region21: #{tpu_custom_call.1} parent=1 // pred_fallthru
      _
    // Predicated region
    $region22: #{tpu_custom_call.1} parent=1 // pred_check
      _
    $region23: #{tpu_custom_call.1} parent=1 // pred_check_branch
      %43 = sbr.rel (0) target = $region25
    $region24: #{tpu_custom_call.1} parent=1 // pred_region
      %45 = dma.done [#allocation6], 16
    $region25: #{tpu_custom_call.1} parent=1 // pred_fallthru
      _
    %v46 = vlaneseq
    %v47 = vshrl.u32 %v46, 7
    %s48 = smul.u32 0, 2
    %v49 = vstv %s48
    %v50 = vadd.s32 %v47, %v49
    %v51 = vmul.u32 %v50, 4
    %v52 = vcvt.s32.f32 %v51
    %v53 = vld [vmem:[#allocation5] sm:$0x1]
    %v55 = vperm.slane %v53, 0
    %v57 = vadd.f32 %v52, %v55
    %v58 = vld [vmem:[#allocation2] sm:$0x1]
    %v60 = vperm.slane %v58, 0
    %v62 = vmul.f32 %v57, %v60
    %v63 = vld [vmem:[%s2] sm:$0x1]
    %v64 = vand.u32 2147483647, %v62
    %vm65 = vcmp.le.f32.partialorder %v64, 0.7853982
    %vm66 = vcmp.lt.s32.totalorder %v62, 0
    %v67 = vand.u32 %v62, 2139095040
    %v68 = vshrl.u32 %v67, 23
    %v69 = vsub.s32 %v68, 127
    %v70 = vand.u32 2147483647, %v62
    %v71 = vand.u32 %v70, 8388607
    %v72 = vor.u32 %v71, 8388608
    %v73 = vsub.s32 0, %v72
    %v74 = vadd.s32 %v69, 1
    %vm75 = vcmp.gt.s32.totalorder %v74, 0
    %v76 = vsel %vm75, %v74, 0
    %v77 = vshrl.u32 %v76, 5
    %v78 = vand.u32 %v76, 31
    %v79 = vsub.s32 32, %v78
    %v80 = vshrl.u32 683565275, %v79
    %v81 = vshll.u32 683565275, %v78
    %v82 = vshrl.u32 2475754826, %v79
    %v83 = vor.u32 %v81, %v82
    %v84 = vshll.u32 2475754826, %v78
    %v85 = vshrl.u32 2131351028, %v79
    %v86 = vor.u32 %v84, %v85
    %v87 = vshll.u32 2131351028, %v78
    %v88 = vshrl.u32 2102212464, %v79
    %v89 = vor.u32 %v87, %v88
    %v90 = vshll.u32 2102212464, %v78
    %v91 = vshrl.u32 920167782, %v79
    %v92 = vor.u32 %v90, %v91
    %v93 = vshll.u32 920167782, %v78
    %v94 = vshrl.u32 1326507024, %v79
    %v95 = vor.u32 %v93, %v94
    %vm96 = vcmp.lt.s32.totalorder %v77, 1
    %vm97 = vcmp.lt.s32.totalorder %v77, 2
    %vm98 = vcmp.lt.s32.totalorder %v77, 3
    %vm99 = vcmp.lt.s32.totalorder %v77, 4
    %v100 = vsel %vm96, %v80, %v83
    %v101 = vsel %vm99, %v89, 2102212464
    %v102 = vsel %vm98, %v86, %v101
    %v103 = vsel %vm97, %v100, %v102
    %v104 = vsel %vm96, %v83, %v86
    %v105 = vsel %vm99, %v92, 920167782
    %v106 = vsel %vm98, %v89, %v105
    %v107 = vsel %vm97, %v104, %v106
    %v108 = vsel %vm96, %v86, %v89
    %v109 = vsel %vm99, %v95, 1326507024
    %v110 = vsel %vm98, %v92, %v109
    %v111 = vsel %vm97, %v108, %v110
    %v112 = vshll.u32 %v72, 8
    %v113 = vand.u32 %v112, 65535
    %v114 = vshrl.u32 %v112, 16
    %v115 = vand.u32 %v111, 65535
    %v116 = vshrl.u32 %v111, 16
    %v117 = vmul.u32 %v113, %v115
    %v118 = vmul.u32 %v113, %v116
    %v119 = vmul.u32 %v114, %v115
    %v120 = vmul.u32 %v114, %v116
    %v121 = vshll.u32 %v118, 16
    %v122 = vshrl.u32 %v118, 16
    %v123 = vshll.u32 %v119, 16
    %v124 = vshrl.u32 %v119, 16
    %vm125 = vc.u32 %v117, %v121
    %v126 = vsel %vm125, 1, 0
    %v127 = vadd.s32 %v117, %v121
    %v128 = vadd.s32 %v120, %v126
    %vm129 = vc.u32 %v127, %v123
    %v130 = vsel %vm129, 1, 0
    %v131 = vadd.s32 %v127, %v123
    %v132 = vadd.s32 %v128, %v130
    %v133 = vadd.s32 %v132, %v122
    %v134 = vadd.s32 %v133, %v124
    %v135 = vand.u32 %v112, 65535
    %v136 = vshrl.u32 %v112, 16
    %v137 = vand.u32 %v107, 65535
    %v138 = vshrl.u32 %v107, 16
    %v139 = vmul.u32 %v135, %v137
    %v140 = vmul.u32 %v135, %v138
    %v141 = vmul.u32 %v136, %v137
    %v142 = vmul.u32 %v136, %v138
    %v143 = vshll.u32 %v140, 16
    %v144 = vshrl.u32 %v140, 16
    %v145 = vshll.u32 %v141, 16
    %v146 = vshrl.u32 %v141, 16
    %vm147 = vc.u32 %v139, %v143
    %v148 = vsel %vm147, 1, 0
    %v149 = vadd.s32 %v139, %v143
    %v150 = vadd.s32 %v142, %v148
    %vm151 = vc.u32 %v149, %v145
    %v152 = vsel %vm151, 1, 0
    %v153 = vadd.s32 %v149, %v145
    %v154 = vadd.s32 %v150, %v152
    %v155 = vadd.s32 %v154, %v144
    %v156 = vadd.s32 %v155, %v146
    %v157 = vmul.u32 %v112, %v103
    %v158 = vadd.s32 %v134, %v153
    %vm159 = vc.u32 %v134, %v153
    %v160 = vadd.s32 %v156, 1
    %v161 = vsel %vm159, %v160, %v156
    %v162 = vadd.s32 %v157, %v161
    %v163 = vadd.s32 %v162, 536870912
    %v164 = vshrl.u32 %v163, 30
    %v165 = vshll.u32 %v164, 30
    %v166 = vsub.s32 %v162, %v165
    %vm167 = vcmp.lt.s32.totalorder %v166, 0
    %v168 = vsub.s32 0, %v166
    %v169 = vsel %vm167, %v168, %v166
    %v170 = vclz %v169
    %v171 = vsub.s32 %v170, 2
    %vm172 = vcmp.gt.s32.totalorder 0, %v171
    %v173 = vsel %vm172, 0, %v171
    %v174 = vsub.s32 32, %v173
    %v175 = vshll.u32 %v166, %v173
    %v176 = vshrl.u32 %v158, %v174
    %v177 = vor.u32 %v175, %v176
    %v178 = vsub.s32 4294967266, %v173
    %v179 = vadd.s32 %v178, 127
    %v180 = vshll.u32 %v179, 23
    %v181 = vor.u32 4788187, %v180
    %v182 = vand.u32 2147483647, %v181
    %v184 = vcvt.s32.f32 %v177
    %v185 = vmul.f32 %v184, %v182
    %v186 = vxor.u32 %v185, 2147483648
    %v187 = vsel %vm66, %v186, %v185
    %v188 = vsub.s32 4, %v164
    %v189 = vsel %vm66, %v188, %v164
    %v190 = vsel %vm65, %v62, %v187
    %v191 = vsel %vm65, 0, %v189
    %v192 = vmul.f32 %v190, %v190
    %v193 = vmul.f32 %v192, -0.001358992
    %v194 = vadd.f32 %v193, 0.041655596
    %v195 = vmul.f32 %v192, %v194
    %v196 = vadd.f32 %v195, -0.4999988
    %v197 = vmul.f32 %v192, %v196
    %v198 = vadd.f32 1.0, %v197
    %v199 = vmul.f32 %v190, %v190
    %v200 = vmul.f32 %v199, -0.00019511016
    %v201 = vadd.f32 %v200, 0.008332121
    %v202 = vmul.f32 %v199, %v201
    %v203 = vadd.f32 %v202, -0.16666654
    %v204 = vmul.f32 %v199, %v203
    %v205 = vadd.f32 %v204, 1.0
    %v206 = vmul.f32 %v205, %v190
    %vm207 = vweird.f32 %v62
    %v208 = vadd.s32 %v191, 3
    %v209 = vand.u32 %v208, 3
    %vm210 = vcmp.lt.s32.totalorder %v209, 2
    %vm211 = vcmp.eq.s32.totalorder %v209, 0
    %v212 = vxor.u32 %v206, 2147483648
    %v213 = vsel %vm211, %v198, %v212
    %vm214 = vcmp.eq.s32.totalorder %v209, 2
    %v215 = vxor.u32 %v198, 2147483648
    %v216 = vsel %vm214, %v215, %v206
    %v217 = vsel %vm210, %v213, %v216
    %v218 = vsel %vm207, nan, %v217
    %v220 = vperm.slane %v63, 0
    %v222 = vmul.f32 %v220, %v218
    %v223 = vld [vmem:[%s3] sm:$0x1]
    %v224 = vand.u32 2147483647, %v62
    %vm225 = vcmp.le.f32.partialorder %v224, 0.7853982
    %vm226 = vcmp.lt.s32.totalorder %v62, 0
    %v227 = vand.u32 %v62, 2139095040
    %v228 = vshrl.u32 %v227, 23
    %v229 = vsub.s32 %v228, 127
    %v230 = vand.u32 2147483647, %v62
    %v231 = vand.u32 %v230, 8388607
    %v232 = vor.u32 %v231, 8388608
    %v233 = vsub.s32 0, %v232
    %v234 = vadd.s32 %v229, 1
    %vm235 = vcmp.gt.s32.totalorder %v234, 0
    %v236 = vsel %vm235, %v234, 0
    %v237 = vshrl.u32 %v236, 5
    %v238 = vand.u32 %v236, 31
    %v239 = vsub.s32 32, %v238
    %v240 = vshrl.u32 683565275, %v239
    %v241 = vshll.u32 683565275, %v238
    %v242 = vshrl.u32 2475754826, %v239
    %v243 = vor.u32 %v241, %v242
    %v244 = vshll.u32 2475754826, %v238
    %v245 = vshrl.u32 2131351028, %v239
    %v246 = vor.u32 %v244, %v245
    %v247 = vshll.u32 2131351028, %v238
    %v248 = vshrl.u32 2102212464, %v239
    %v249 = vor.u32 %v247, %v248
    %v250 = vshll.u32 2102212464, %v238
    %v251 = vshrl.u32 920167782, %v239
    %v252 = vor.u32 %v250, %v251
    %v253 = vshll.u32 920167782, %v238
    %v254 = vshrl.u32 1326507024, %v239
    %v255 = vor.u32 %v253, %v254
    %vm256 = vcmp.lt.s32.totalorder %v237, 1
    %vm257 = vcmp.lt.s32.totalorder %v237, 2
    %vm258 = vcmp.lt.s32.totalorder %v237, 3
    %vm259 = vcmp.lt.s32.totalorder %v237, 4
    %v260 = vsel %vm256, %v240, %v243
    %v261 = vsel %vm259, %v249, 2102212464
    %v262 = vsel %vm258, %v246, %v261
    %v263 = vsel %vm257, %v260, %v262
    %v264 = vsel %vm256, %v243, %v246
    %v265 = vsel %vm259, %v252, 920167782
    %v266 = vsel %vm258, %v249, %v265
    %v267 = vsel %vm257, %v264, %v266
    %v268 = vsel %vm256, %v246, %v249
    %v269 = vsel %vm259, %v255, 1326507024
    %v270 = vsel %vm258, %v252, %v269
    %v271 = vsel %vm257, %v268, %v270
    %v272 = vshll.u32 %v232, 8
    %v273 = vand.u32 %v272, 65535
    %v274 = vshrl.u32 %v272, 16
    %v275 = vand.u32 %v271, 65535
    %v276 = vshrl.u32 %v271, 16
    %v277 = vmul.u32 %v273, %v275
    %v278 = vmul.u32 %v273, %v276
    %v279 = vmul.u32 %v274, %v275
    %v280 = vmul.u32 %v274, %v276
    %v281 = vshll.u32 %v278, 16
    %v282 = vshrl.u32 %v278, 16
    %v283 = vshll.u32 %v279, 16
    %v284 = vshrl.u32 %v279, 16
    %vm285 = vc.u32 %v277, %v281
    %v286 = vsel %vm285, 1, 0
    %v287 = vadd.s32 %v277, %v281
    %v288 = vadd.s32 %v280, %v286
    %vm289 = vc.u32 %v287, %v283
    %v290 = vsel %vm289, 1, 0
    %v291 = vadd.s32 %v287, %v283
    %v292 = vadd.s32 %v288, %v290
    %v293 = vadd.s32 %v292, %v282
    %v294 = vadd.s32 %v293, %v284
    %v295 = vand.u32 %v272, 65535
    %v296 = vshrl.u32 %v272, 16
    %v297 = vand.u32 %v267, 65535
    %v298 = vshrl.u32 %v267, 16
    %v299 = vmul.u32 %v295, %v297
    %v300 = vmul.u32 %v295, %v298
    %v301 = vmul.u32 %v296, %v297
    %v302 = vmul.u32 %v296, %v298
    %v303 = vshll.u32 %v300, 16
    %v304 = vshrl.u32 %v300, 16
    %v305 = vshll.u32 %v301, 16
    %v306 = vshrl.u32 %v301, 16
    %vm307 = vc.u32 %v299, %v303
    %v308 = vsel %vm307, 1, 0
    %v309 = vadd.s32 %v299, %v303
    %v310 = vadd.s32 %v302, %v308
    %vm311 = vc.u32 %v309, %v305
    %v312 = vsel %vm311, 1, 0
    %v313 = vadd.s32 %v309, %v305
    %v314 = vadd.s32 %v310, %v312
    %v315 = vadd.s32 %v314, %v304
    %v316 = vadd.s32 %v315, %v306
    %v317 = vmul.u32 %v272, %v263
    %v318 = vadd.s32 %v294, %v313
    %vm319 = vc.u32 %v294, %v313
    %v320 = vadd.s32 %v316, 1
    %v321 = vsel %vm319, %v320, %v316
    %v322 = vadd.s32 %v317, %v321
    %v323 = vadd.s32 %v322, 536870912
    %v324 = vshrl.u32 %v323, 30
    %v325 = vshll.u32 %v324, 30
    %v326 = vsub.s32 %v322, %v325
    %vm327 = vcmp.lt.s32.totalorder %v326, 0
    %v328 = vsub.s32 0, %v326
    %v329 = vsel %vm327, %v328, %v326
    %v330 = vclz %v329
    %v331 = vsub.s32 %v330, 2
    %vm332 = vcmp.gt.s32.totalorder 0, %v331
    %v333 = vsel %vm332, 0, %v331
    %v334 = vsub.s32 32, %v333
    %v335 = vshll.u32 %v326, %v333
    %v336 = vshrl.u32 %v318, %v334
    %v337 = vor.u32 %v335, %v336
    %v338 = vsub.s32 4294967266, %v333
    %v339 = vadd.s32 %v338, 127
    %v340 = vshll.u32 %v339, 23
    %v341 = vor.u32 4788187, %v340
    %v342 = vand.u32 2147483647, %v341
    %v344 = vcvt.s32.f32 %v337
    %v345 = vmul.f32 %v344, %v342
    %v346 = vxor.u32 %v345, 2147483648
    %v347 = vsel %vm226, %v346, %v345
    %v348 = vsub.s32 4, %v324
    %v349 = vsel %vm226, %v348, %v324
    %v350 = vsel %vm225, %v62, %v347
    %v351 = vsel %vm225, 0, %v349
    %v352 = vmul.f32 %v350, %v350
    %v353 = vmul.f32 %v352, -0.001358992
    %v354 = vadd.f32 %v353, 0.041655596
    %v355 = vmul.f32 %v352, %v354
    %v356 = vadd.f32 %v355, -0.4999988
    %v357 = vmul.f32 %v352, %v356
    %v358 = vadd.f32 1.0, %v357
    %v359 = vmul.f32 %v350, %v350
    %v360 = vmul.f32 %v359, -0.00019511016
    %v361 = vadd.f32 %v360, 0.008332121
    %v362 = vmul.f32 %v359, %v361
    %v363 = vadd.f32 %v362, -0.16666654
    %v364 = vmul.f32 %v359, %v363
    %v365 = vadd.f32 %v364, 1.0
    %v366 = vmul.f32 %v365, %v350
    %vm367 = vweird.f32 %v62
    %v368 = vand.u32 %v351, 3
    %vm369 = vcmp.lt.s32.totalorder %v368, 2
    %vm370 = vcmp.eq.s32.totalorder %v368, 0
    %v371 = vxor.u32 %v366, 2147483648
    %v372 = vsel %vm370, %v358, %v371
    %vm373 = vcmp.eq.s32.totalorder %v368, 2
    %v374 = vxor.u32 %v358, 2147483648
    %v375 = vsel %vm373, %v374, %v366
    %v376 = vsel %vm369, %v372, %v375
    %v377 = vsel %vm367, nan, %v376
    %v379 = vperm.slane %v223, 0
    %v381 = vmul.f32 %v379, %v377
    %v382 = vadd.f32 %v222, %v381
    %383 = vst [vmem:[#allocation7] sm:$0x3] %v382
    // Predicated region
    $region26: #{tpu_custom_call.1} parent=1 // pred_check
      _
    $region27: #{tpu_custom_call.1} parent=1 // pred_check_branch
      %385 = sbr.rel (0) target = $region29
    $region28: #{tpu_custom_call.1} parent=1 // pred_region
      %387 = vsyncadd [#allocation4], 0
      %s389 = sshll.u32 [#allocation7], 4
      %s390 = int_to_ptr.vmem [resolvable:$true] %s389
      %s391 = sshll.u32 %s4, 4
      %s392 = int_to_ptr.hbm [resolvable:$true] %s391
      %394 = dma.vmem_to_hbm [thread:$0]  %s390, 32, %s392, [#allocation4]
    $region29: #{tpu_custom_call.1} parent=1 // pred_fallthru
      _
    // Predicated region
    $region30: #{tpu_custom_call.1} parent=1 // pred_check
      _
    $region31: #{tpu_custom_call.1} parent=1 // pred_check_branch
      %396 = sbr.rel (0) target = $region33
    $region32: #{tpu_custom_call.1} parent=1 // pred_region
      %398 = dma.done [#allocation4], 32
    $region33: #{tpu_custom_call.1} parent=1 // pred_fallthru
      _
    %399 = vsyncpa [#allocation3], 1
    %400 = vsyncpa [#allocation6], 1
    %401 = vsyncpa [#allocation4], 1

</llo_original>
